<compile_context>
chip_gen: v7x
topology: tpu7x:2x2x1
jax: 0.10.0
libtpu: 0.0.40
codegen_flags: <defaults>
</compile_context>

<pallas_src>
import jax
import jax.numpy as jnp
from jax import lax
from jax.experimental import pallas as pl
from jax.experimental.pallas import tpu as pltpu


def _pooler_kernel(x_ref, w_ref, b_ref, o_ref):
    # x_ref: (B, H)        first-token hidden states (resident across all N tiles)
    # w_ref: (TILE_N, H)   weight slab, PyTorch layout (out_features, in_features)
    # b_ref: (1, TILE_N)   bias slab
    # o_ref: (B, TILE_N)   pooled output slab
    # y = x @ W^T for this out_features slab, contracting over in_features without
    # materializing W^T (same rhs-minor-dim contraction Mosaic handles for q@k^T).
    y = lax.dot_general(
        x_ref[...],
        w_ref[...],
        dimension_numbers=(((1,), (1,)), ((), ())),
        preferred_element_type=jnp.float32,
    )
    y = y + b_ref[...].astype(jnp.float32)
    o_ref[...] = jnp.tanh(y).astype(o_ref.dtype)


def _vmem_capacity_bytes():
    """Queried VMEM capacity; conservative v7x-class default if the query fails."""
    try:
        info = pltpu.get_tpu_info()
        cap = getattr(info, "vmem_capacity_bytes", None)
        if cap:
            return int(cap)
    except Exception:
        pass
    return 64 << 20


def _pick_tile_n(h, itemsize, per_buffer_budget):
    """Tile size along out_features for the streamed (tile_n, H) weight slabs.

    Prefers the largest 128-aligned divisor of H whose slab fits one pipeline
    buffer, biased toward an even tile count (>= 2) so the weight stream splits
    across both TensorCores on v7x. Falls back to a ragged (masked) final tile
    when H has no 128-aligned divisor, so the whole weight never has to sit in
    VMEM at once.
    """
    row_bytes = h * itemsize
    # Largest 128-multiple row count whose slab fits one pipeline buffer.
    cap = max((per_buffer_budget // row_bytes) // 128 * 128, 128)

    if h % 128 == 0:
        divisors = [d for d in range(128, h + 1, 128) if h % d == 0 and d <= cap]
        if divisors:
            even = [d for d in divisors if (h // d) % 2 == 0]
            return max(even) if even else max(divisors)
        return 128  # budget smaller than one 128-row slab: stream minimum slabs
    if h <= 512:
        # Tiny / oddly-sized layer: one whole tile (full-dim blocks are always legal).
        return h
    # Ragged grid: 128-aligned tile; Pallas masks the final partial block.
    return int(min(cap, -(-h // 128) * 128))


def pooler_forward(hidden_states, weight, bias):
    """hidden_states: [B, S, H]; weight: [H, H] (out, in) PyTorch layout; bias: [H]."""
    B, S, H = hidden_states.shape
    # Glue: first token (tiny [B, H] intermediate; the weight stream dominates traffic).
    first_token = hidden_states[:, 0, :]            # [B, H]
    bias2d = bias.reshape(1, H)                     # [1, H]

    w_itemsize = jnp.dtype(weight.dtype).itemsize
    vmem_cap = _vmem_capacity_bytes()
    # ~1/6 of VMEM per pipeline buffer: ~21 MiB on 128-MiB parts, ~10 MiB on v7x.
    per_buffer_budget = max(vmem_cap // 6, 4 << 20)

    tile_n = _pick_tile_n(H, w_itemsize, per_buffer_budget)
    n_tiles = pl.cdiv(H, tile_n)

    vmem_needed = (
        2 * tile_n * H * w_itemsize                                        # weight (double-buffered)
        + 2 * B * H * jnp.dtype(first_token.dtype).itemsize                # resident x
        + 2 * B * tile_n * jnp.dtype(hidden_states.dtype).itemsize         # output slabs
        + 2 * tile_n * jnp.dtype(bias.dtype).itemsize                      # bias slabs
    )
    vmem_limit = int(max(min(vmem_needed + (4 << 20), vmem_cap - (4 << 20)), 16 << 20))

    return pl.pallas_call(
        _pooler_kernel,
        out_shape=jax.ShapeDtypeStruct((B, H), hidden_states.dtype),
        grid_spec=pltpu.PrefetchScalarGridSpec(
            num_scalar_prefetch=0,
            grid=(n_tiles,),
            in_specs=[
                # x resident across the N grid axis (constant block index -> one DMA).
                pl.BlockSpec((B, H), lambda j: (0, 0)),
                # Stream the weight over out_features slabs (PyTorch layout, no transpose).
                pl.BlockSpec((tile_n, H), lambda j: (j, 0)),
                pl.BlockSpec((1, tile_n), lambda j: (0, j)),
            ],
            out_specs=pl.BlockSpec((B, tile_n), lambda j: (0, j)),
        ),
        compiler_params=pltpu.CompilerParams(
            # Each output slab is written exactly once -> safe to shard the N axis
            # across TensorCores (2 TCs on v7x split the weight stream); no-op on
            # single-TC v5e/v6e.
            dimension_semantics=("parallel",),
            vmem_limit_bytes=vmem_limit,
        ),
    )(first_token, weight, bias2d)


if __name__ == "__main__":
    key = jax.random.PRNGKey(0)

    def run_case(B, S, H, dtype, atol):
        k_x, k_w, k_b = jax.random.split(jax.random.fold_in(key, H), 3)
        hs = jax.random.normal(k_x, (B, S, H), dtype=jnp.float32).astype(dtype)
        # Deterministic synthetic parameters (nn.Linear(hidden_size, hidden_size)).
        w = (jax.random.normal(k_w, (H, H), dtype=jnp.float32) * 0.02).astype(dtype)
        b = (jax.random.normal(k_b, (H,), dtype=jnp.float32) * 0.02).astype(dtype)

        out = jax.block_until_ready(pooler_forward(hs, w, b))
        assert out.shape == (B, H)

        ref = jnp.tanh(
            hs[:, 0, :].astype(jnp.float32) @ w.astype(jnp.float32).T
            + b.astype(jnp.float32)
        )
        err = float(jnp.max(jnp.abs(out.astype(jnp.float32) - ref)))
        assert err <= atol, (H, str(dtype), err)

    # Primary small shape consistent with the module.
    run_case(B=2, S=8, H=32, dtype=jnp.float32, atol=1e-3)
    # Tiled, 128-aligned path (weight streamed over 2 out_features slabs).
    run_case(B=4, S=8, H=256, dtype=jnp.float32, atol=1e-3)
    # bf16 weight-streaming path (half the HBM bytes), tiled.
    run_case(B=2, S=8, H=512, dtype=jnp.bfloat16, atol=3e-2)

    print("KERNEL_OK")
</pallas_src>

<mosaic_0001>
module attributes {stable_mosaic.version = 11 : i64} {
  func.func @_pooler_kernel(%arg0: i32, %arg1: memref<2x32xf32, #tpu.memory_space<vmem>>, %arg2: memref<32x32xf32, #tpu.memory_space<vmem>>, %arg3: memref<1x32xf32, #tpu.memory_space<vmem>>, %arg4: memref<2x32xf32, #tpu.memory_space<vmem>>) attributes {dimension_semantics = [#tpu.dimension_semantics<parallel>], iteration_bounds = array<i64: 1>, scalar_prefetch = 0 : i64, scratch_operands = 0 : i64, tpu.core_type = #tpu.core_type<tc>, window_params = [{pipeline_mode = #tpu.pipeline_mode<synchronous>, transform_indices = @transform_0, window_bounds = array<i64: 2, 32>}, {transform_indices = @transform_1, window_bounds = array<i64: 32, 32>}, {transform_indices = @transform_2, window_bounds = array<i64: 1, 32>}, {transform_indices = @transform_3, window_bounds = array<i64: 2, 32>}]} {
    %c0 = arith.constant 0 : index
    %c0_0 = arith.constant 0 : index
    %0 = vector.load %arg1[%c0, %c0_0] : memref<2x32xf32, #tpu.memory_space<vmem>>, vector<2x32xf32>
    %c0_1 = arith.constant 0 : index
    %c0_2 = arith.constant 0 : index
    %1 = vector.load %arg2[%c0_1, %c0_2] : memref<32x32xf32, #tpu.memory_space<vmem>>, vector<32x32xf32>
    %cst = arith.constant dense<0.000000e+00> : vector<2x32xf32>
    %2 = tpu.matmul %0, %1, %cst {dimension_numbers = #tpu.dot_dimension_numbers<[1], [1], [0], [0], [0, 0, 1, 0], [], []>} : vector<2x32xf32>, vector<32x32xf32>, vector<2x32xf32> -> vector<2x32xf32>
    %c0_3 = arith.constant 0 : index
    %c0_4 = arith.constant 0 : index
    %3 = vector.load %arg3[%c0_3, %c0_4] : memref<1x32xf32, #tpu.memory_space<vmem>>, vector<1x32xf32>
    %4 = vector.broadcast %3 : vector<1x32xf32> to vector<2x32xf32>
    %5 = arith.addf %2, %4 : vector<2x32xf32>
    %6 = math.tanh %5 : vector<2x32xf32>
    %c0_5 = arith.constant 0 : index
    %c0_6 = arith.constant 0 : index
    %7 = vector.load %arg4[%c0_5, %c0_6] : memref<2x32xf32, #tpu.memory_space<vmem>>, vector<2x32xf32>
    tpu.vector_store %arg4[%c0_5, %c0_6], %6 {strides = array<i32>} : memref<2x32xf32, #tpu.memory_space<vmem>>, vector<2x32xf32>,
    return
  }
  func.func @transform_0(%arg0: i32) -> (i32, i32) {
    %c0_i32 = arith.constant 0 : i32
    %c0_i32_0 = arith.constant 0 : i32
    %c0_i32_1 = arith.constant 0 : i32
    return %c0_i32, %c0_i32_0 : i32, i32
  }
  func.func @transform_1(%arg0: i32) -> (i32, i32) {
    %c0_i32 = arith.constant 0 : i32
    %c0_i32_0 = arith.constant 0 : i32
    return %arg0, %c0_i32 : i32, i32
  }
  func.func @transform_2(%arg0: i32) -> (i32, i32) {
    %c0_i32 = arith.constant 0 : i32
    %c0_i32_0 = arith.constant 0 : i32
    return %c0_i32, %arg0 : i32, i32
  }
  func.func @transform_3(%arg0: i32) -> (i32, i32) {
    %c0_i32 = arith.constant 0 : i32
    %c0_i32_0 = arith.constant 0 : i32
    return %c0_i32, %arg0 : i32, i32
  }
}

</mosaic_0001>

<llo_original>
// kernel: tpu_custom_call.1
$region0: #{tpu_custom_call.1}
  #allocation0 [shape = 'u32[]', space=smem, size = 0x4, offset = 0x4, fixed_abs, tag = 'smem constant byte address 0x4 - core index']
  #allocation1 [shape = 'u32[144,128]{1,0:T(1,128)}', space=vmem, size = 0x12000, scoped, tag = 'internal scratch']
  %s0 = inlined_call_operand.hbm [shape: f32[2,32], index: 0, kind: input, shape index: {}]
  %s1 = inlined_call_operand.hbm [shape: f32[32,32], index: 1, kind: input, shape index: {}]
  %s2 = inlined_call_operand.vmem [shape: f32[1,32], index: 2, kind: input, shape index: {}]
  %s3 = inlined_call_operand.hbm [shape: f32[2,32], index: 3, kind: output, shape index: {}]
  %s4 = sld [smem:[#allocation0]]
  $region30: #{tpu_custom_call.1} parent=0
    _
  %s6 = ssub.s32 1, %s4
  %s7 = scalar_select 0, %s6, %s4
  $region1: #{tpu_custom_call.1} parent=0
    #allocation2 [shape = 'u8[1024]{0}', space=vmem, size = 0x400, scoped, tag = 'input window, operand 0, single buffered']
    #allocation3 [shape = 's32[1]{0}', space=sflag, size = 0x4, scoped, tag = 'scoped memory for tpu_custom_call.1']
    #allocation4 [shape = 's32[1]{0}', space=sflag, size = 0x4, scoped, tag = 'scoped memory for tpu_custom_call.1']
    #allocation5 [shape = 'u8[16384]{0}', space=vmem, size = 0x4000, scoped, tag = 'input window, operand 1, single buffered']
    #allocation6 [shape = 's32[1]{0}', space=sflag, size = 0x4, scoped, tag = 'scoped memory for tpu_custom_call.1']
    #allocation7 [shape = 'u8[1024]{0}', space=vmem, size = 0x400, scoped, tag = 'output window, operand 0, single buffered']
    %8 = vsyncpa [#allocation3], 0
    %9 = vsyncpa [#allocation6], 0
    %10 = vsyncpa [#allocation4], 0
    // Predicated region
    $region2: #{tpu_custom_call.1} parent=1 // pred_check
      _
    $region3: #{tpu_custom_call.1} parent=1 // pred_check_branch
      %12 = sbr.rel (0) target = $region5
    $region4: #{tpu_custom_call.1} parent=1 // pred_region
      %s14 = ssub.s32 32, 32
      %15 = vsyncadd [#allocation3], %s14
      %s17 = sshll.u32 [#allocation2], 4
      %s18 = int_to_ptr.vmem [resolvable:$true] %s17
      %20 = dma.hbm_to_vmem [thread:$0]  %s0, 32, %s18, [#allocation3]
    $region5: #{tpu_custom_call.1} parent=1 // pred_fallthru
      _
    // Predicated region
    $region6: #{tpu_custom_call.1} parent=1 // pred_check
      _
    $region7: #{tpu_custom_call.1} parent=1 // pred_check_branch
      %22 = sbr.rel (0) target = $region9
    $region8: #{tpu_custom_call.1} parent=1 // pred_region
      %s24 = ssub.s32 512, 512
      %25 = vsyncadd [#allocation6], %s24
      %s26 = sshll.u32 [#allocation5], 4
      %s27 = int_to_ptr.vmem [resolvable:$true] %s26
      %32 = dma.hbm_to_vmem [thread:$0]  %s1, 512, %s27, [#allocation6], 128, 128, 8
    $region9: #{tpu_custom_call.1} parent=1 // pred_fallthru
      _
    // Predicated region
    $region10: #{tpu_custom_call.1} parent=1 // pred_check
      _
    $region11: #{tpu_custom_call.1} parent=1 // pred_check_branch
      %34 = sbr.rel (0) target = $region13
    $region12: #{tpu_custom_call.1} parent=1 // pred_region
      _
    $region13: #{tpu_custom_call.1} parent=1 // pred_fallthru
      _
    // Predicated region
    $region14: #{tpu_custom_call.1} parent=1 // pred_check
      _
    $region15: #{tpu_custom_call.1} parent=1 // pred_check_branch
      %36 = sbr.rel (0) target = $region17
    $region16: #{tpu_custom_call.1} parent=1 // pred_region
      %37 = dma.done [#allocation3], 32
    $region17: #{tpu_custom_call.1} parent=1 // pred_fallthru
      _
    // Predicated region
    $region18: #{tpu_custom_call.1} parent=1 // pred_check
      _
    $region19: #{tpu_custom_call.1} parent=1 // pred_check_branch
      %39 = sbr.rel (0) target = $region21
    $region20: #{tpu_custom_call.1} parent=1 // pred_region
      %40 = dma.done [#allocation6], 512
    $region21: #{tpu_custom_call.1} parent=1 // pred_fallthru
      _
    %v41 = vld [vmem:[#allocation2] sm:$0x3]
    %v42 = vld [vmem:[#allocation5] sm:$0xff]
    %v43 = vld [vmem:[#allocation5 + $0x8] sm:$0xff]
    %v44 = vld [vmem:[#allocation5 + $0x10] sm:$0xff]
    %v45 = vld [vmem:[#allocation5 + $0x18] sm:$0xff]
    %v46 = vld [vmem:[%s2] sm:$0x1]
    %v48 = vlaneseq
    %v49 = vshrl.u32 %v48, 7
    %v50 = vsub.s32 0, %v49
    %v51 = vrot.slane %v46, %v50
    %vm53 = vcmask 261120
    %v55 = vsel %vm53, %v41, 0
    %v58 = vsel %vm53, %v42, 0
    %v61 = vsel %vm53, %v43, 0
    %v64 = vsel %vm53, %v44, 0
    %v67 = vsel %vm53, %v45, 0
    %69 = vmatprep.subr.mxu0 0.0
    %70 = vmatpush1.xpose.msra.mxu0 %v58
    %71 = vmatprep.subr.mxu0 0.0
    %72 = vmatpush1.xpose.msra.mxu0 %v61
    %73 = vmatprep.subr.mxu0 0.0
    %74 = vmatpush1.xpose.msra.mxu0 %v64
    %75 = vmatprep.subr.mxu0 0.0
    %76 = vmatpush1.xpose.msra.mxu0 %v67
    %77 = vmatprep.subr.mxu0 0.0
    %78 = vmatpush1.xpose.msra.mxu0 0.0
    %79 = vmatprep.subr.mxu0 0.0
    %80 = vmatpush1.xpose.msra.mxu0 0.0
    %81 = vmatprep.subr.mxu0 0.0
    %82 = vmatpush1.xpose.msra.mxu0 0.0
    %83 = vmatprep.subr.mxu0 0.0
    %84 = vmatpush1.xpose.msra.mxu0 0.0
    %85 = vmatprep.subr.mxu0 0.0
    %86 = vmatpush1.xpose.msra.mxu0 0.0
    %87 = vmatprep.subr.mxu0 0.0
    %88 = vmatpush1.xpose.msra.mxu0 0.0
    %89 = vmatprep.subr.mxu0 0.0
    %90 = vmatpush1.xpose.msra.mxu0 0.0
    %91 = vmatprep.subr.mxu0 0.0
    %92 = vmatpush1.xpose.msra.mxu0 0.0
    %93 = vmatprep.subr.mxu0 0.0
    %94 = vmatpush1.xpose.msra.mxu0 0.0
    %95 = vmatprep.subr.mxu0 0.0
    %96 = vmatpush1.xpose.msra.mxu0 0.0
    %97 = vmatprep.subr.mxu0 0.0
    %98 = vmatpush1.xpose.msra.mxu0 0.0
    %99 = vmatprep.subr.mxu0 0.0
    %100 = vmatpush1.xpose.msra.mxu0 0.0
    %101 = vmatprep.subr.mxu0 0.0
    %102 = vmatpush1.xpose.msra.mxu0 0.0
    %103 = vmatprep.subr.mxu0 0.0
    %104 = vmatpush1.xpose.msra.mxu0 0.0
    %105 = vmatprep.subr.mxu0 0.0
    %106 = vmatpush1.xpose.msra.mxu0 0.0
    %107 = vmatprep.subr.mxu0 0.0
    %108 = vmatpush1.xpose.msra.mxu0 0.0
    %109 = vmatprep.subr.mxu0 0.0
    %110 = vmatpush1.xpose.msra.mxu0 0.0
    %111 = vmatprep.subr.mxu0 0.0
    %112 = vmatpush1.xpose.msra.mxu0 0.0
    %113 = vmatprep.subr.mxu0 0.0
    %114 = vmatpush1.xpose.msra.mxu0 0.0
    %115 = vmatprep.subr.mxu0 0.0
    %116 = vmatpush1.xpose.msra.mxu0 0.0
    %117 = vmatprep.subr.mxu0 0.0
    %118 = vmatpush1.xpose.msra.mxu0 0.0
    %119 = vmatprep.subr.mxu0 0.0
    %120 = vmatpush1.xpose.msra.mxu0 0.0
    %121 = vmatprep.subr.mxu0 0.0
    %122 = vmatpush1.xpose.msra.mxu0 0.0
    %123 = vmatprep.subr.mxu0 0.0
    %124 = vmatpush1.xpose.msra.mxu0 0.0
    %125 = vmatprep.subr.mxu0 0.0
    %126 = vmatpush1.xpose.msra.mxu0 0.0
    %127 = vmatprep.subr.mxu0 0.0
    %128 = vmatpush1.xpose.msra.mxu0 0.0
    %129 = vmatprep.subr.mxu0 0.0
    %130 = vmatpush1.xpose.msra.mxu0 0.0
    %131 = vmatprep.subr.mxu0 0.0
    %132 = vmatpush1.xpose.msra.mxu0 0.0
    %133 = vmatprep.mubr.f32.mxu0 0.0
    %134 = vmatmul.mubr.f32.gmra.mrb[0].mxu0 %v55
    %v135 = vpop.f32.mrb[0].mxu0
    %v136 = vadd.f32 %v51, %v135
    %v137 = vpop.f32.mrb[0].mxu0
    %138 = vdwg.mxu0
    %v139 = vtanh.pop %v136
    %vm140 = vcmask 254976
    %141 = vst.msk [vmem:[#allocation7] sm:$0x3] %vm140, %v139
    // Predicated region
    $region22: #{tpu_custom_call.1} parent=1 // pred_check
      _
    $region23: #{tpu_custom_call.1} parent=1 // pred_check_branch
      %143 = sbr.rel (0) target = $region25
    $region24: #{tpu_custom_call.1} parent=1 // pred_region
      %s145 = ssub.s32 32, 32
      %146 = vsyncadd [#allocation4], %s145
      %s148 = sshll.u32 [#allocation7], 4
      %s149 = int_to_ptr.vmem [resolvable:$true] %s148
      %151 = dma.vmem_to_hbm [thread:$0]  %s149, 32, %s3, [#allocation4]
    $region25: #{tpu_custom_call.1} parent=1 // pred_fallthru
      _
    // Predicated region
    $region26: #{tpu_custom_call.1} parent=1 // pred_check
      _
    $region27: #{tpu_custom_call.1} parent=1 // pred_check_branch
      %153 = sbr.rel (0) target = $region29
    $region28: #{tpu_custom_call.1} parent=1 // pred_region
      %154 = dma.done [#allocation4], 32
    $region29: #{tpu_custom_call.1} parent=1 // pred_fallthru
      _
    %155 = vsyncpa [#allocation3], 1
    %156 = vsyncpa [#allocation6], 1
    %157 = vsyncpa [#allocation4], 1

</llo_original>
